<compile_context>
chip_gen: v7x
topology: tpu7x:2x2x1
jax: 0.10.0
libtpu: 0.0.40
codegen_flags: <defaults>
</compile_context>

<pallas_src>
import jax
import jax.numpy as jnp
from jax.experimental import pallas as pl
from jax.experimental.pallas import tpu as pltpu


# --------------------------------------------------------------------------- #
# Kernel
# --------------------------------------------------------------------------- #
def _build_kernel(num_hidden_extra):
    """Fused similarity + MLP + predict + sigmoid kernel (edges on the lane axis)."""

    def kernel(*refs):
        g1_ref, g2_ref, wv_ref, w0c_ref, w0d_ref, b0_ref = refs[:6]
        rest = refs[6:]
        hidden_wb = [(rest[2 * i], rest[2 * i + 1]) for i in range(num_hidden_extra)]
        wp_ref, bp_ref, out_ref = rest[2 * num_hidden_extra:]

        eps2 = jnp.float32(1e-16)  # (1e-8)^2 — identical clamp as reference under rsqrt

        # Embeddings may be staged as bf16 (halves HBM/DMA bytes); upcast once on
        # load and keep every reduction / downstream op in f32.
        a = g1_ref[...].astype(jnp.float32)            # (2n, D, TE)  node1 rows
        b = g2_ref[...].astype(jnp.float32)            # (2n, D, TE)  node2 rows
        dot = jnp.sum(a * b, axis=1)                   # (2n, TE)
        na2 = jnp.sum(a * a, axis=1)
        nb2 = jnp.sum(b * b, axis=1)
        # cos = dot / max(||a||*||b||, 1e-8) == dot * rsqrt(max(na2*nb2, 1e-16))
        cos = dot * jax.lax.rsqrt(jnp.maximum(na2 * nb2, eps2))

        wv = wv_ref[...]                               # (2n, 2): [:,0]=cos w, [:,1]=dot w
        sim_cos = wv[:, 0:1] * cos                     # (2n, TE)
        sim_dot = wv[:, 1:2] * dot                     # (2n, TE)

        # First Linear as two GEMMs over duplicated-column weights — no sublane
        # concat / slice relayout in the kernel.
        h = (jnp.dot(w0c_ref[...], sim_cos, preferred_element_type=jnp.float32)
             + jnp.dot(w0d_ref[...], sim_dot, preferred_element_type=jnp.float32)
             + b0_ref[...])
        # TODO(synk): nn.Dropout layers are inference no-ops here (eval semantics).
        h = jnp.maximum(h, 0.0)                        # ReLU
        for wt_ref, hb_ref in hidden_wb:
            h = jnp.dot(wt_ref[...], h, preferred_element_type=jnp.float32) + hb_ref[...]
            h = jnp.maximum(h, 0.0)

        # M=1 predict layer: broadcast-mul + sublane reduce (VPU/XLU), no MXU pass.
        p = jnp.sum(wp_ref[...] * h, axis=0, keepdims=True) + bp_ref[...]
        out_ref[...] = jax.nn.sigmoid(p)               # (1, TE), lane-dense store

    return kernel


# --------------------------------------------------------------------------- #
# One-time parameter / embedding packing (hoisted out of the per-call path)
# --------------------------------------------------------------------------- #
def prepare_params(params):
    w1 = params["weight_vec1"].reshape(-1).astype(jnp.float32)      # (2n,)
    w2 = params["weight_vec2"].reshape(-1).astype(jnp.float32)
    # Rows 0..n-1 belong to the z1 half, rows n..2n-1 to the z2 half.
    # Column 0 = cos weights (even entries), column 1 = dot weights (odd entries).
    wv = jnp.stack([jnp.concatenate([w1[0::2], w2[0::2]]),
                    jnp.concatenate([w1[1::2], w2[1::2]])], axis=1)  # (2n, 2)

    W0 = params["mlp_w"][0].astype(jnp.float32)                     # (2n, h0), (in, out)
    # Duplicate the cos / dot input columns so that both the z1 and z2 halves of
    # the (2n, TE) similarity matrices hit the same first-layer weights.
    w0c = jnp.tile(W0[0::2, :].T, (1, 2))                           # (h0, 2n)
    w0d = jnp.tile(W0[1::2, :].T, (1, 2))                           # (h0, 2n)
    b0 = params["mlp_b"][0].astype(jnp.float32)[:, None]            # (h0, 1)

    hidden = []
    for i in range(1, len(params["mlp_w"])):
        hidden.append(params["mlp_w"][i].astype(jnp.float32).T)       # (h_i, h_{i-1})
        hidden.append(params["mlp_b"][i].astype(jnp.float32)[:, None])  # (h_i, 1)

    wp = params["predict_w"].astype(jnp.float32)                    # (h_last, 1) column
    bp = params["predict_b"].astype(jnp.float32)[:, None]           # (1, 1)

    return {"wv": wv, "w0c": w0c, "w0d": w0d, "b0": b0, "hidden": tuple(hidden),
            "wp": wp, "bp": bp, "num_hidden_extra": len(hidden) // 2}


def prepare_embeddings(z1_trains, z2_trains, emb_dtype=jnp.bfloat16):
    """Stack z1/z2 once into a (2n, N, D) table; bf16 halves gather/DMA bytes."""
    z = jnp.concatenate([jnp.asarray(z1_trains), jnp.asarray(z2_trains)], axis=0)
    return z.astype(emb_dtype)


# --------------------------------------------------------------------------- #
# Wrapper
# --------------------------------------------------------------------------- #
def _round_up(x, m):
    return ((x + m - 1) // m) * m


_VMEM_BUDGET = 48 << 20   # safe under v7x's 64 MiB physical VMEM


def mlp_mia_forward_batched(edges, z_stacked, prepared, *, tile_e=512):
    """edges: (E, 2) int node indices; z_stacked: (2n, N, D). Returns (E,) preds."""
    edges = jnp.asarray(edges)
    E = int(edges.shape[0])
    two_n, _, D = z_stacked.shape
    two_n, D = int(two_n), int(D)
    emb_bytes = jnp.dtype(z_stacked.dtype).itemsize

    consts = [prepared["wv"], prepared["w0c"], prepared["w0d"], prepared["b0"],
              *prepared["hidden"], prepared["wp"], prepared["bp"]]
    const_bytes = sum(int(a.size) * 4 for a in consts)

    # ---- VMEM budget: 2 emb inputs x 2 pipeline buffers + 2 x output per lane --
    per_lane_bytes = 2 * 2 * two_n * D * emb_bytes + 2 * 4
    max_tile_by_vmem = max(
        128, ((_VMEM_BUDGET - 2 * const_bytes) // per_lane_bytes) // 128 * 128)

    # ---- Tile choice: never below 128 lanes; keep grid >= 2 where possible -----
    tile = max(128, min(int(tile_e), max_tile_by_vmem)) // 128 * 128
    E128 = _round_up(max(E, 1), 128)
    if E128 <= 128:
        tile = 128
    else:
        tile = min(tile, max(128, (E128 // 2 // 128) * 128))
    E_pad = _round_up(E, tile)
    grid = E_pad // tile
    if grid > 1 and grid % 2 == 1:      # even grid -> balanced across v7x's 2 TCs
        grid += 1
        E_pad = grid * tile

    node1 = jnp.pad(edges[:, 0].astype(jnp.int32), (0, E_pad - E))
    node2 = jnp.pad(edges[:, 1].astype(jnp.int32), (0, E_pad - E))

    def gather(idx):
        # (2n, N, D) rows -> (2n, D, E_pad): D on sublanes, edges on lanes.
        return jnp.transpose(z_stacked[:, idx, :], (0, 2, 1))

    g1 = gather(node1)
    g2 = gather(node2)

    args = [g1, g2, prepared["wv"], prepared["w0c"], prepared["w0d"], prepared["b0"],
            *prepared["hidden"], prepared["wp"], prepared["bp"]]

    emb_spec = pl.BlockSpec((two_n, D, tile), lambda i: (0, 0, i))

    def const_spec(a):
        return pl.BlockSpec(a.shape, lambda i, _n=a.ndim: (0,) * _n)

    in_specs = [emb_spec, emb_spec] + [const_spec(a) for a in args[2:]]
    out_spec = pl.BlockSpec((1, tile), lambda i: (0, i))

    # ---- Cost estimate so XLA overlaps the gather HLOs with the kernel ---------
    h_dims = [prepared["b0"].shape[0]] + [
        prepared["hidden"][2 * i + 1].shape[0]
        for i in range(prepared["num_hidden_extra"])]
    flops = 4 * two_n * h_dims[0] * E_pad                     # two K=2n GEMMs
    for a, b in zip(h_dims[:-1], h_dims[1:]):
        flops += 2 * a * b * E_pad
    flops += 2 * h_dims[-1] * E_pad                           # predict reduce
    flops += 8 * two_n * D * E_pad                            # similarity elementwise
    cost = pl.CostEstimate(
        flops=int(flops),
        transcendentals=int((two_n + 1) * E_pad),             # rsqrt + sigmoid
        bytes_accessed=int(2 * two_n * D * E_pad * emb_bytes + 4 * E_pad + const_bytes))

    needed_vmem = per_lane_bytes * tile + 2 * const_bytes + (1 << 20)
    vmem_limit = int(min(_VMEM_BUDGET, max(needed_vmem, 32 << 20)))

    out = pl.pallas_call(
        _build_kernel(prepared["num_hidden_extra"]),
        out_shape=jax.ShapeDtypeStruct((1, E_pad), jnp.float32),
        grid=(grid,),
        in_specs=in_specs,
        out_specs=out_spec,
        compiler_params=pltpu.CompilerParams(
            dimension_semantics=("parallel",),
            vmem_limit_bytes=vmem_limit),
        cost_estimate=cost,
    )(*args)
    return out[0, :E]


def mlp_mia_forward(edge, z_stacked, prepared):
    """Original module semantics: one edge -> shape-(1,) prediction."""
    edges = jnp.asarray(edge, jnp.int32).reshape(1, 2)
    return mlp_mia_forward_batched(edges, z_stacked, prepared)


# --------------------------------------------------------------------------- #
# Synthetic params + pure-JAX reference (PyTorch semantics, f32)
# --------------------------------------------------------------------------- #
def init_params(key, lay_1_dim, hidden_layer):
    keys = jax.random.split(key, 3 + len(hidden_layer))
    params = {}
    params["weight_vec1"] = jax.random.normal(keys[0], (1, 2 * lay_1_dim), dtype=jnp.float32)
    params["weight_vec2"] = jax.random.normal(keys[1], (1, 2 * lay_1_dim), dtype=jnp.float32)
    in_dims = [2 * lay_1_dim] + list(hidden_layer[:-1])
    mlp_w, mlp_b = [], []
    for i, (fi, fo) in enumerate(zip(in_dims, hidden_layer)):
        limit = (6.0 / (fi + fo)) ** 0.5          # xavier_uniform_
        mlp_w.append(jax.random.uniform(keys[2 + i], (fi, fo), jnp.float32, -limit, limit))
        mlp_b.append(jnp.zeros((fo,), jnp.float32))
    params["mlp_w"] = mlp_w
    params["mlp_b"] = mlp_b
    fi = hidden_layer[-1]
    bound = (3.0 / fi) ** 0.5                     # kaiming_uniform_(a=1, 'sigmoid'): gain=1
    params["predict_w"] = jax.random.uniform(keys[-1], (fi, 1), jnp.float32, -bound, bound)
    params["predict_b"] = jnp.zeros((1,), jnp.float32)
    return params


def reference_batched(edges, z1_trains, z2_trains, params):
    edges = jnp.asarray(edges)
    node1 = edges[:, 0].astype(jnp.int32)
    node2 = edges[:, 1].astype(jnp.int32)

    def feats(zs):
        e1 = zs[:, node1, :].astype(jnp.float32)                 # (n, E, D)
        e2 = zs[:, node2, :].astype(jnp.float32)
        dot = jnp.sum(e1 * e2, axis=2)                           # (n, E)
        cos = dot / jnp.maximum(
            jnp.linalg.norm(e1, axis=2) * jnp.linalg.norm(e2, axis=2), 1e-8)
        inter = jnp.stack([cos, dot], axis=2)                    # (n, E, 2)
        return jnp.transpose(inter, (1, 0, 2)).reshape(edges.shape[0], -1)  # (E, 2n)

    embs1 = feats(z1_trains)
    embs2 = feats(z2_trains)
    sim = params["weight_vec1"] * embs1 + params["weight_vec2"] * embs2
    h = sim
    for W, b in zip(params["mlp_w"], params["mlp_b"]):
        h = jnp.maximum(h @ W + b[None, :], 0.0)
    p = h @ params["predict_w"] + params["predict_b"][None, :]
    return jax.nn.sigmoid(p).reshape(-1)                         # (E,)


if __name__ == "__main__":
    key = jax.random.PRNGKey(0)
    n_mats = 4        # number of embedding matrices == lay_1_dim
    num_nodes = 16
    emb_dim = 8
    hidden_layer = [32, 16]

    k1, k2, kp, ke = jax.random.split(key, 4)
    z1_trains = jax.random.normal(k1, (n_mats, num_nodes, emb_dim), dtype=jnp.float32)
    z2_trains = jax.random.normal(k2, (n_mats, num_nodes, emb_dim), dtype=jnp.float32)

    params = init_params(kp, n_mats, hidden_layer)
    prepared = prepare_params(params)                       # one-time packing
    z_f32 = prepare_embeddings(z1_trains, z2_trains, jnp.float32)
    z_bf16 = prepare_embeddings(z1_trains, z2_trains, jnp.bfloat16)

    # Batched path (primary): many edges per pallas_call.
    E = 200
    edges = jax.random.randint(ke, (E, 2), 0, num_nodes, dtype=jnp.int32)
    ref = reference_batched(edges, z1_trains, z2_trains, params)

    # Exact (f32) embedding path — strict tolerance against the f32 reference.
    preds_f32 = mlp_mia_forward_batched(edges, z_f32, prepared)
    jax.block_until_ready(preds_f32)
    assert preds_f32.shape == (E,)
    assert jnp.allclose(preds_f32, ref, atol=1e-3, rtol=1e-3), (preds_f32[:4], ref[:4])

    # bf16-staged embeddings (perf path) — f32 accumulation; tolerance relaxed
    # only for the bf16 rounding of the gathered embeddings.
    preds_bf16 = mlp_mia_forward_batched(edges, z_bf16, prepared)
    jax.block_until_ready(preds_bf16)
    assert preds_bf16.shape == (E,)
    assert jnp.allclose(preds_bf16, ref, atol=2e-2, rtol=2e-2), (preds_bf16[:4], ref[:4])

    # Single-edge path (original module's forward signature / semantics).
    edge_list = jnp.array([3, 7], dtype=jnp.int32)   # (node1, node2)
    pred1 = mlp_mia_forward(edge_list, z_f32, prepared)
    jax.block_until_ready(pred1)
    ref1 = reference_batched(edge_list[None, :], z1_trains, z2_trains, params)
    assert pred1.shape == (1,)
    assert jnp.allclose(pred1, ref1, atol=1e-3, rtol=1e-3), (pred1, ref1)

    print("KERNEL_OK")
</pallas_src>

<mosaic_0001>
module attributes {stable_mosaic.version = 11 : i64} {
  func.func @kernel(%arg0: i32, %arg1: memref<8x8x128xf32, #tpu.memory_space<vmem>>, %arg2: memref<8x8x128xf32, #tpu.memory_space<vmem>>, %arg3: memref<8x2xf32, #tpu.memory_space<vmem>>, %arg4: memref<32x8xf32, #tpu.memory_space<vmem>>, %arg5: memref<32x8xf32, #tpu.memory_space<vmem>>, %arg6: memref<32x1xf32, #tpu.memory_space<vmem>>, %arg7: memref<16x32xf32, #tpu.memory_space<vmem>>, %arg8: memref<16x1xf32, #tpu.memory_space<vmem>>, %arg9: memref<16x1xf32, #tpu.memory_space<vmem>>, %arg10: memref<1x1xf32, #tpu.memory_space<vmem>>, %arg11: memref<1x128xf32, #tpu.memory_space<vmem>>) attributes {dimension_semantics = [#tpu.dimension_semantics<parallel>], iteration_bounds = array<i64: 2>, scalar_prefetch = 0 : i64, scratch_operands = 0 : i64, tpu.core_type = #tpu.core_type<tc>, window_params = [{transform_indices = @transform_0, window_bounds = array<i64: 8, 8, 128>}, {transform_indices = @transform_1, window_bounds = array<i64: 8, 8, 128>}, {pipeline_mode = #tpu.pipeline_mode<synchronous>, transform_indices = @transform_2, window_bounds = array<i64: 8, 2>}, {pipeline_mode = #tpu.pipeline_mode<synchronous>, transform_indices = @transform_3, window_bounds = array<i64: 32, 8>}, {pipeline_mode = #tpu.pipeline_mode<synchronous>, transform_indices = @transform_4, window_bounds = array<i64: 32, 8>}, {pipeline_mode = #tpu.pipeline_mode<synchronous>, transform_indices = @transform_5, window_bounds = array<i64: 32, 1>}, {pipeline_mode = #tpu.pipeline_mode<synchronous>, transform_indices = @transform_6, window_bounds = array<i64: 16, 32>}, {pipeline_mode = #tpu.pipeline_mode<synchronous>, transform_indices = @transform_7, window_bounds = array<i64: 16, 1>}, {pipeline_mode = #tpu.pipeline_mode<synchronous>, transform_indices = @transform_8, window_bounds = array<i64: 16, 1>}, {pipeline_mode = #tpu.pipeline_mode<synchronous>, transform_indices = @transform_9, window_bounds = array<i64: 1, 1>}, {transform_indices = @transform_10, window_bounds = array<i64: 1, 128>}]} {
    %c0 = arith.constant 0 : index
    %c0_0 = arith.constant 0 : index
    %c0_1 = arith.constant 0 : index
    %0 = vector.load %arg1[%c0, %c0_0, %c0_1] : memref<8x8x128xf32, #tpu.memory_space<vmem>>, vector<8x8x128xf32>
    %c0_2 = arith.constant 0 : index
    %c0_3 = arith.constant 0 : index
    %c0_4 = arith.constant 0 : index
    %1 = vector.load %arg2[%c0_2, %c0_3, %c0_4] : memref<8x8x128xf32, #tpu.memory_space<vmem>>, vector<8x8x128xf32>
    %2 = arith.mulf %0, %1 : vector<8x8x128xf32>
    %cst = arith.constant dense<0.000000e+00> : vector<8x128xf32>
    %3 = vector.multi_reduction <add>, %2, %cst [1] : vector<8x8x128xf32> to vector<8x128xf32>
    %4 = arith.mulf %0, %0 : vector<8x8x128xf32>
    %cst_5 = arith.constant dense<0.000000e+00> : vector<8x128xf32>
    %5 = vector.multi_reduction <add>, %4, %cst_5 [1] : vector<8x8x128xf32> to vector<8x128xf32>
    %6 = arith.mulf %1, %1 : vector<8x8x128xf32>
    %cst_6 = arith.constant dense<0.000000e+00> : vector<8x128xf32>
    %7 = vector.multi_reduction <add>, %6, %cst_6 [1] : vector<8x8x128xf32> to vector<8x128xf32>
    %8 = arith.mulf %5, %7 : vector<8x128xf32>
    %cst_7 = arith.constant 1.000000e-16 : f32
    %9 = vector.broadcast %cst_7 : f32 to vector<8x128xf32>
    %10 = arith.maximumf %8, %9 : vector<8x128xf32>
    %11 = math.rsqrt %10 : vector<8x128xf32>
    %12 = arith.mulf %3, %11 : vector<8x128xf32>
    %c0_8 = arith.constant 0 : index
    %c0_9 = arith.constant 0 : index
    %13 = vector.load %arg3[%c0_8, %c0_9] : memref<8x2xf32, #tpu.memory_space<vmem>>, vector<8x2xf32>
    %14 = vector.extract_strided_slice %13 {offsets = [0, 0], sizes = [8, 1], strides = [1, 1]} : vector<8x2xf32> to vector<8x1xf32>
    %15 = vector.broadcast %14 : vector<8x1xf32> to vector<8x128xf32>
    %16 = arith.mulf %15, %12 : vector<8x128xf32>
    %17 = vector.extract_strided_slice %13 {offsets = [0, 1], sizes = [8, 1], strides = [1, 1]} : vector<8x2xf32> to vector<8x1xf32>
    %18 = vector.broadcast %17 : vector<8x1xf32> to vector<8x128xf32>
    %19 = arith.mulf %18, %3 : vector<8x128xf32>
    %c0_10 = arith.constant 0 : index
    %c0_11 = arith.constant 0 : index
    %20 = vector.load %arg4[%c0_10, %c0_11] : memref<32x8xf32, #tpu.memory_space<vmem>>, vector<32x8xf32>
    %cst_12 = arith.constant dense<0.000000e+00> : vector<32x128xf32>
    %21 = tpu.matmul %20, %16, %cst_12 {dimension_numbers = #tpu.dot_dimension_numbers<[1], [0], [0], [1], [0, 0, 1, 1], [], []>} : vector<32x8xf32>, vector<8x128xf32>, vector<32x128xf32> -> vector<32x128xf32>
    %c0_13 = arith.constant 0 : index
    %c0_14 = arith.constant 0 : index
    %22 = vector.load %arg5[%c0_13, %c0_14] : memref<32x8xf32, #tpu.memory_space<vmem>>, vector<32x8xf32>
    %cst_15 = arith.constant dense<0.000000e+00> : vector<32x128xf32>
    %23 = tpu.matmul %22, %19, %cst_15 {dimension_numbers = #tpu.dot_dimension_numbers<[1], [0], [0], [1], [0, 0, 1, 1], [], []>} : vector<32x8xf32>, vector<8x128xf32>, vector<32x128xf32> -> vector<32x128xf32>
    %24 = arith.addf %21, %23 : vector<32x128xf32>
    %c0_16 = arith.constant 0 : index
    %c0_17 = arith.constant 0 : index
    %25 = vector.load %arg6[%c0_16, %c0_17] : memref<32x1xf32, #tpu.memory_space<vmem>>, vector<32x1xf32>
    %26 = vector.broadcast %25 : vector<32x1xf32> to vector<32x128xf32>
    %27 = arith.addf %24, %26 : vector<32x128xf32>
    %cst_18 = arith.constant 0.000000e+00 : f32
    %28 = vector.broadcast %cst_18 : f32 to vector<32x128xf32>
    %29 = arith.maximumf %27, %28 : vector<32x128xf32>
    %c0_19 = arith.constant 0 : index
    %c0_20 = arith.constant 0 : index
    %30 = vector.load %arg7[%c0_19, %c0_20] : memref<16x32xf32, #tpu.memory_space<vmem>>, vector<16x32xf32>
    %cst_21 = arith.constant dense<0.000000e+00> : vector<16x128xf32>
    %31 = tpu.matmul %30, %29, %cst_21 {dimension_numbers = #tpu.dot_dimension_numbers<[1], [0], [0], [1], [0, 0, 1, 1], [], []>} : vector<16x32xf32>, vector<32x128xf32>, vector<16x128xf32> -> vector<16x128xf32>
    %c0_22 = arith.constant 0 : index
    %c0_23 = arith.constant 0 : index
    %32 = vector.load %arg8[%c0_22, %c0_23] : memref<16x1xf32, #tpu.memory_space<vmem>>, vector<16x1xf32>
    %33 = vector.broadcast %32 : vector<16x1xf32> to vector<16x128xf32>
    %34 = arith.addf %31, %33 : vector<16x128xf32>
    %cst_24 = arith.constant 0.000000e+00 : f32
    %35 = vector.broadcast %cst_24 : f32 to vector<16x128xf32>
    %36 = arith.maximumf %34, %35 : vector<16x128xf32>
    %c0_25 = arith.constant 0 : index
    %c0_26 = arith.constant 0 : index
    %37 = vector.load %arg9[%c0_25, %c0_26] : memref<16x1xf32, #tpu.memory_space<vmem>>, vector<16x1xf32>
    %38 = vector.broadcast %37 : vector<16x1xf32> to vector<16x128xf32>
    %39 = arith.mulf %38, %36 : vector<16x128xf32>
    %cst_27 = arith.constant dense<0.000000e+00> : vector<128xf32>
    %40 = vector.multi_reduction <add>, %39, %cst_27 [0] : vector<16x128xf32> to vector<128xf32>
    %41 = vector.shape_cast %40 : vector<128xf32> to vector<1x128xf32>
    %c0_28 = arith.constant 0 : index
    %c0_29 = arith.constant 0 : index
    %42 = vector.load %arg10[%c0_28, %c0_29] : memref<1x1xf32, #tpu.memory_space<vmem>>, vector<1x1xf32>
    %43 = vector.broadcast %42 : vector<1x1xf32> to vector<1x128xf32>
    %44 = arith.addf %41, %43 : vector<1x128xf32>
    %45 = arith.negf %44 : vector<1x128xf32>
    %46 = math.exp %45 : vector<1x128xf32>
    %cst_30 = arith.constant 1.000000e+00 : f32
    %47 = vector.broadcast %cst_30 : f32 to vector<1x128xf32>
    %48 = arith.addf %47, %46 : vector<1x128xf32>
    %49 = arith.divf %47, %48 : vector<1x128xf32>
    %c0_31 = arith.constant 0 : index
    %c0_32 = arith.constant 0 : index
    %50 = vector.load %arg11[%c0_31, %c0_32] : memref<1x128xf32, #tpu.memory_space<vmem>>, vector<1x128xf32>
    tpu.vector_store %arg11[%c0_31, %c0_32], %49 {strides = array<i32>} : memref<1x128xf32, #tpu.memory_space<vmem>>, vector<1x128xf32>,
    return
  }
  func.func @transform_0(%arg0: i32) -> (i32, i32, i32) {
    %c0_i32 = arith.constant 0 : i32
    %c0_i32_0 = arith.constant 0 : i32
    %c0_i32_1 = arith.constant 0 : i32
    return %c0_i32, %c0_i32_0, %arg0 : i32, i32, i32
  }
  func.func @transform_1(%arg0: i32) -> (i32, i32, i32) {
    %c0_i32 = arith.constant 0 : i32
    %c0_i32_0 = arith.constant 0 : i32
    %c0_i32_1 = arith.constant 0 : i32
    return %c0_i32, %c0_i32_0, %arg0 : i32, i32, i32
  }
  func.func @transform_2(%arg0: i32) -> (i32, i32) {
    %c0_i32 = arith.constant 0 : i32
    %c0_i32_0 = arith.constant 0 : i32
    %c0_i32_1 = arith.constant 0 : i32
    return %c0_i32, %c0_i32_0 : i32, i32
  }
  func.func @transform_3(%arg0: i32) -> (i32, i32) {
    %c0_i32 = arith.constant 0 : i32
    %c0_i32_0 = arith.constant 0 : i32
    %c0_i32_1 = arith.constant 0 : i32
    return %c0_i32, %c0_i32_0 : i32, i32
  }
  func.func @transform_4(%arg0: i32) -> (i32, i32) {
    %c0_i32 = arith.constant 0 : i32
    %c0_i32_0 = arith.constant 0 : i32
    %c0_i32_1 = arith.constant 0 : i32
    return %c0_i32, %c0_i32_0 : i32, i32
  }
  func.func @transform_5(%arg0: i32) -> (i32, i32) {
    %c0_i32 = arith.constant 0 : i32
    %c0_i32_0 = arith.constant 0 : i32
    %c0_i32_1 = arith.constant 0 : i32
    return %c0_i32, %c0_i32_0 : i32, i32
  }
  func.func @transform_6(%arg0: i32) -> (i32, i32) {
    %c0_i32 = arith.constant 0 : i32
    %c0_i32_0 = arith.constant 0 : i32
    %c0_i32_1 = arith.constant 0 : i32
    return %c0_i32, %c0_i32_0 : i32, i32
  }
  func.func @transform_7(%arg0: i32) -> (i32, i32) {
    %c0_i32 = arith.constant 0 : i32
    %c0_i32_0 = arith.constant 0 : i32
    %c0_i32_1 = arith.constant 0 : i32
    return %c0_i32, %c0_i32_0 : i32, i32
  }
  func.func @transform_8(%arg0: i32) -> (i32, i32) {
    %c0_i32 = arith.constant 0 : i32
    %c0_i32_0 = arith.constant 0 : i32
    %c0_i32_1 = arith.constant 0 : i32
    return %c0_i32, %c0_i32_0 : i32, i32
  }
  func.func @transform_9(%arg0: i32) -> (i32, i32) {
    %c0_i32 = arith.constant 0 : i32
    %c0_i32_0 = arith.constant 0 : i32
    %c0_i32_1 = arith.constant 0 : i32
    return %c0_i32, %c0_i32_0 : i32, i32
  }
  func.func @transform_10(%arg0: i32) -> (i32, i32) {
    %c0_i32 = arith.constant 0 : i32
    %c0_i32_0 = arith.constant 0 : i32
    return %c0_i32, %arg0 : i32, i32
  }
}

</mosaic_0001>

<llo_original>
// kernel: tpu_custom_call.1
$region0: #{tpu_custom_call.1}
  #allocation0 [shape = 'u32[]', space=smem, size = 0x4, offset = 0x4, fixed_abs, tag = 'smem constant byte address 0x4 - core index']
  #allocation1 [shape = 'u32[144,128]{1,0:T(1,128)}', space=vmem, size = 0x12000, scoped, tag = 'internal scratch']
  #allocation2 [shape = 'f32[1,1]{1,0:T(1,128)S(1)}', space=vmem, size = 0x200, scoped, tag = 'scoped memory for tpu_custom_call.1']
  %s0 = inlined_call_operand.vmem [shape: f32[8,8,256], index: 0, kind: input, shape index: {}]
  %s1 = inlined_call_operand.hbm [shape: f32[8,8,256], index: 1, kind: input, shape index: {}]
  %s2 = inlined_call_operand.vmem [shape: f32[8,2], index: 2, kind: input, shape index: {}]
  %s3 = inlined_call_operand.vmem [shape: f32[32,8], index: 3, kind: input, shape index: {}]
  %s4 = inlined_call_operand.vmem [shape: f32[32,8], index: 4, kind: input, shape index: {}]
  %s5 = inlined_call_operand.vmem [shape: f32[32,1], index: 5, kind: input, shape index: {}]
  %s6 = inlined_call_operand.vmem [shape: f32[16,32], index: 6, kind: input, shape index: {}]
  %s7 = inlined_call_operand.vmem [shape: f32[16,1], index: 7, kind: input, shape index: {}]
  %s8 = inlined_call_operand.vmem [shape: f32[16,1], index: 8, kind: input, shape index: {}]
  %s9 = inlined_call_operand.<no memory space> [shape: f32[1,1], index: 9, kind: input, shape index: {}]
  %s10 = inlined_call_operand.hbm [shape: f32[1,256], index: 10, kind: output, shape index: {}]
  %s11 = sld [smem:[#allocation0]]
  $region115: #{tpu_custom_call.1} parent=0
    _
  %s13 = ssub.s32 1, %s11
  %s14 = scalar_select 0, %s13, %s11
  %v15 = vstv %s9
  %16 = vst [vmem:[#allocation2] sm:$0x1] %v15
  $region1: #{tpu_custom_call.1} parent=0
    #allocation3 [shape = 'u8[65536]{0}', space=vmem, size = 0x10000, scoped, tag = 'input window, operand 0']
    #allocation4 [shape = 'u8[65536]{0}', space=vmem, size = 0x10000, scoped, tag = 'input window, operand 1']
    #allocation5 [shape = 's32[2]{0}', space=sflag, size = 0x8, scoped, tag = 'scoped memory for tpu_custom_call.1']
    #allocation6 [shape = 's32[2]{0}', space=sflag, size = 0x8, scoped, tag = 'scoped memory for tpu_custom_call.1']
    #allocation7 [shape = 'u8[1024]{0}', space=vmem, size = 0x400, scoped, tag = 'output window, operand 0']
    %17 = vsyncpa [#allocation5], 0
    %s18 = scalar_lea.sflag [#allocation5], 1
    %19 = vsyncpa %s18, 0
    %20 = vsyncpa [#allocation6], 0
    %s21 = scalar_lea.sflag [#allocation6], 1
    %22 = vsyncpa %s21, 0
    loop: start=0, step=1, limit=4
    $region2: #{tpu_custom_call.1} parent=1 // loop_pre_header
      _
    $region3: #{tpu_custom_call.1} parent=1 // loop_header
      %s24 = sphi 0, %s28
      %p25 = scmp.ge.s32.totalorder %s24, 4
      %s34 = sphi 0, %s36
      %s37 = sphi 0, %s34
      %s38 = sphi 0, %s37
      %s54 = sphi 0, %s38
      %s60 = sphi 0, %s62
      %s63 = sphi 0, %s60
      %s64 = sphi 0, %s63
      %s80 = sphi 0, %s64
      %s84 = sphi 0, %s84
      %s86 = sphi 0, %s84
      %s87 = sphi 0, %s86
      %s101 = sphi 0, %s87
      %s105 = sphi 0, %s105
      %s107 = sphi 0, %s105
      %s108 = sphi 0, %s107
      %s122 = sphi 0, %s108
      %s126 = sphi 0, %s126
      %s128 = sphi 0, %s126
      %s129 = sphi 0, %s128
      %s143 = sphi 0, %s129
      %s147 = sphi 0, %s147
      %s149 = sphi 0, %s147
      %s150 = sphi 0, %s149
      %s164 = sphi 0, %s150
      %s168 = sphi 0, %s168
      %s170 = sphi 0, %s168
      %s171 = sphi 0, %s170
      %s185 = sphi 0, %s171
      %s189 = sphi 0, %s189
      %s191 = sphi 0, %s189
      %s192 = sphi 0, %s191
      %s206 = sphi 0, %s192
      %s210 = sphi 0, %s210
      %s212 = sphi 0, %s210
      %s213 = sphi 0, %s212
      %s227 = sphi 0, %s213
      %s231 = sphi 0, %s231
      %s233 = sphi 0, %s231
      %s234 = sphi 0, %s233
      %s248 = sphi 0, %s234
      %s254 = sphi 0, %s256
      %s257 = sphi 0, %s254
      %s258 = sphi 0, %s257
      %s274 = sphi 0, %s258
    $region4: #{tpu_custom_call.1} parent=1 // loop_header_branch
      %27 = sbr.rel (%p25) target = $region8
    $region5: #{tpu_custom_call.1} parent=1 // loop_body
      %s29 = ssub.s32 %s24, 1
      %s30 = ssub.s32 %s24, 2
      %s31 = sadd.s32 %s24, 1
      %s32 = ssub.s32 %s24, %s31
      %p33 = scmp.eq.s32.totalorder %s32, 0
      %s35 = sadd.s32 %s34, 1
      %s36 = scalar_select %p33, %s34, %s35
      %p39 = pneg %p33
      %p40 = scmp.eq.s32.totalorder %s24, 1
      %p41 = por %p39, %p40
      %p42 = scmp.ne.s32.totalorder %s34, %s37
      %p43 = scmp.eq.s32.totalorder %s24, 0
      %p44 = por %p42, %p43
      %p45 = scmp.ne.s32.totalorder %s34, %s37
      %p46 = scmp.eq.s32.totalorder %s29, 1
      %p47 = por %p45, %p46
      %p48 = scmp.ne.s32.totalorder %s37, %s38
      %p49 = scmp.eq.s32.totalorder %s29, 0
      %p50 = por %p48, %p49
      %p51 = scmp.ne.s32.totalorder %s37, %s38
      %p52 = scmp.eq.s32.totalorder %s30, 1
      %p53 = por %p51, %p52
      %p55 = scmp.ne.s32.totalorder %s38, %s54
      %p56 = scmp.eq.s32.totalorder %s30, 0
      %p57 = por %p55, %p56
      %s58 = ssub.s32 %s24, %s31
      %p59 = scmp.eq.s32.totalorder %s58, 0
      %s61 = sadd.s32 %s60, 1
      %s62 = scalar_select %p59, %s60, %s61
      %p65 = pneg %p59
      %p66 = scmp.eq.s32.totalorder %s24, 1
      %p67 = por %p65, %p66
      %p68 = scmp.ne.s32.totalorder %s60, %s63
      %p69 = scmp.eq.s32.totalorder %s24, 0
      %p70 = por %p68, %p69
      %p71 = scmp.ne.s32.totalorder %s60, %s63
      %p72 = scmp.eq.s32.totalorder %s29, 1
      %p73 = por %p71, %p72
      %p74 = scmp.ne.s32.totalorder %s63, %s64
      %p75 = scmp.eq.s32.totalorder %s29, 0
      %p76 = por %p74, %p75
      %p77 = scmp.ne.s32.totalorder %s63, %s64
      %p78 = scmp.eq.s32.totalorder %s30, 1
      %p79 = por %p77, %p78
      %p81 = scmp.ne.s32.totalorder %s64, %s80
      %p82 = scmp.eq.s32.totalorder %s30, 0
      %p83 = por %p81, %p82
      %s85 = sadd.s32 %s84, 1
      %p88 = scmp.eq.s32.totalorder %s24, 1
      %p89 = scmp.ne.s32.totalorder %s84, %s86
      %p90 = scmp.eq.s32.totalorder %s24, 0
      %p91 = por %p89, %p90
      %p92 = scmp.ne.s32.totalorder %s84, %s86
      %p93 = scmp.eq.s32.totalorder %s29, 1
      %p94 = por %p92, %p93
      %p95 = scmp.ne.s32.totalorder %s86, %s87
      %p96 = scmp.eq.s32.totalorder %s29, 0
      %p97 = por %p95, %p96
      %p98 = scmp.ne.s32.totalorder %s86, %s87
      %p99 = scmp.eq.s32.totalorder %s30, 1
      %p100 = por %p98, %p99
      %p102 = scmp.ne.s32.totalorder %s87, %s101
      %p103 = scmp.eq.s32.totalorder %s30, 0
      %p104 = por %p102, %p103
      %s106 = sadd.s32 %s105, 1
      %p109 = scmp.eq.s32.totalorder %s24, 1
      %p110 = scmp.ne.s32.totalorder %s105, %s107
      %p111 = scmp.eq.s32.totalorder %s24, 0
      %p112 = por %p110, %p111
      %p113 = scmp.ne.s32.totalorder %s105, %s107
      %p114 = scmp.eq.s32.totalorder %s29, 1
      %p115 = por %p113, %p114
      %p116 = scmp.ne.s32.totalorder %s107, %s108
      %p117 = scmp.eq.s32.totalorder %s29, 0
      %p118 = por %p116, %p117
      %p119 = scmp.ne.s32.totalorder %s107, %s108
      %p120 = scmp.eq.s32.totalorder %s30, 1
      %p121 = por %p119, %p120
      %p123 = scmp.ne.s32.totalorder %s108, %s122
      %p124 = scmp.eq.s32.totalorder %s30, 0
      %p125 = por %p123, %p124
      %s127 = sadd.s32 %s126, 1
      %p130 = scmp.eq.s32.totalorder %s24, 1
      %p131 = scmp.ne.s32.totalorder %s126, %s128
      %p132 = scmp.eq.s32.totalorder %s24, 0
      %p133 = por %p131, %p132
      %p134 = scmp.ne.s32.totalorder %s126, %s128
      %p135 = scmp.eq.s32.totalorder %s29, 1
      %p136 = por %p134, %p135
      %p137 = scmp.ne.s32.totalorder %s128, %s129
      %p138 = scmp.eq.s32.totalorder %s29, 0
      %p139 = por %p137, %p138
      %p140 = scmp.ne.s32.totalorder %s128, %s129
      %p141 = scmp.eq.s32.totalorder %s30, 1
      %p142 = por %p140, %p141
      %p144 = scmp.ne.s32.totalorder %s129, %s143
      %p145 = scmp.eq.s32.totalorder %s30, 0
      %p146 = por %p144, %p145
      %s148 = sadd.s32 %s147, 1
      %p151 = scmp.eq.s32.totalorder %s24, 1
      %p152 = scmp.ne.s32.totalorder %s147, %s149
      %p153 = scmp.eq.s32.totalorder %s24, 0
      %p154 = por %p152, %p153
      %p155 = scmp.ne.s32.totalorder %s147, %s149
      %p156 = scmp.eq.s32.totalorder %s29, 1
      %p157 = por %p155, %p156
      %p158 = scmp.ne.s32.totalorder %s149, %s150
      %p159 = scmp.eq.s32.totalorder %s29, 0
      %p160 = por %p158, %p159
      %p161 = scmp.ne.s32.totalorder %s149, %s150
      %p162 = scmp.eq.s32.totalorder %s30, 1
      %p163 = por %p161, %p162
      %p165 = scmp.ne.s32.totalorder %s150, %s164
      %p166 = scmp.eq.s32.totalorder %s30, 0
      %p167 = por %p165, %p166
      %s169 = sadd.s32 %s168, 1
      %p172 = scmp.eq.s32.totalorder %s24, 1
      %p173 = scmp.ne.s32.totalorder %s168, %s170
      %p174 = scmp.eq.s32.totalorder %s24, 0
      %p175 = por %p173, %p174
      %p176 = scmp.ne.s32.totalorder %s168, %s170
      %p177 = scmp.eq.s32.totalorder %s29, 1
      %p178 = por %p176, %p177
      %p179 = scmp.ne.s32.totalorder %s170, %s171
      %p180 = scmp.eq.s32.totalorder %s29, 0
      %p181 = por %p179, %p180
      %p182 = scmp.ne.s32.totalorder %s170, %s171
      %p183 = scmp.eq.s32.totalorder %s30, 1
      %p184 = por %p182, %p183
      %p186 = scmp.ne.s32.totalorder %s171, %s185
      %p187 = scmp.eq.s32.totalorder %s30, 0
      %p188 = por %p186, %p187
      %s190 = sadd.s32 %s189, 1
      %p193 = scmp.eq.s32.totalorder %s24, 1
      %p194 = scmp.ne.s32.totalorder %s189, %s191
      %p195 = scmp.eq.s32.totalorder %s24, 0
      %p196 = por %p194, %p195
      %p197 = scmp.ne.s32.totalorder %s189, %s191
      %p198 = scmp.eq.s32.totalorder %s29, 1
      %p199 = por %p197, %p198
      %p200 = scmp.ne.s32.totalorder %s191, %s192
      %p201 = scmp.eq.s32.totalorder %s29, 0
      %p202 = por %p200, %p201
      %p203 = scmp.ne.s32.totalorder %s191, %s192
      %p204 = scmp.eq.s32.totalorder %s30, 1
      %p205 = por %p203, %p204
      %p207 = scmp.ne.s32.totalorder %s192, %s206
      %p208 = scmp.eq.s32.totalorder %s30, 0
      %p209 = por %p207, %p208
      %s211 = sadd.s32 %s210, 1
      %p214 = scmp.eq.s32.totalorder %s24, 1
      %p215 = scmp.ne.s32.totalorder %s210, %s212
      %p216 = scmp.eq.s32.totalorder %s24, 0
      %p217 = por %p215, %p216
      %p218 = scmp.ne.s32.totalorder %s210, %s212
      %p219 = scmp.eq.s32.totalorder %s29, 1
      %p220 = por %p218, %p219
      %p221 = scmp.ne.s32.totalorder %s212, %s213
      %p222 = scmp.eq.s32.totalorder %s29, 0
      %p223 = por %p221, %p222
      %p224 = scmp.ne.s32.totalorder %s212, %s213
      %p225 = scmp.eq.s32.totalorder %s30, 1
      %p226 = por %p224, %p225
      %p228 = scmp.ne.s32.totalorder %s213, %s227
      %p229 = scmp.eq.s32.totalorder %s30, 0
      %p230 = por %p228, %p229
      %s232 = sadd.s32 %s231, 1
      %p235 = scmp.eq.s32.totalorder %s24, 1
      %p236 = scmp.ne.s32.totalorder %s231, %s233
      %p237 = scmp.eq.s32.totalorder %s24, 0
      %p238 = por %p236, %p237
      %p239 = scmp.ne.s32.totalorder %s231, %s233
      %p240 = scmp.eq.s32.totalorder %s29, 1
      %p241 = por %p239, %p240
      %p242 = scmp.ne.s32.totalorder %s233, %s234
      %p243 = scmp.eq.s32.totalorder %s29, 0
      %p244 = por %p242, %p243
      %p245 = scmp.ne.s32.totalorder %s233, %s234
      %p246 = scmp.eq.s32.totalorder %s30, 1
      %p247 = por %p245, %p246
      %p249 = scmp.ne.s32.totalorder %s234, %s248
      %p250 = scmp.eq.s32.totalorder %s30, 0
      %p251 = por %p249, %p250
      %s252 = ssub.s32 %s24, %s31
      %p253 = scmp.eq.s32.totalorder %s252, 0
      %s255 = sadd.s32 %s254, 1
      %s256 = scalar_select %p253, %s254, %s255
      %p259 = pneg %p253
      %p260 = scmp.eq.s32.totalorder %s24, 1
      %p261 = por %p259, %p260
      %p262 = scmp.ne.s32.totalorder %s254, %s257
      %p263 = scmp.eq.s32.totalorder %s24, 0
      %p264 = por %p262, %p263
      %p265 = scmp.ne.s32.totalorder %s254, %s257
      %p266 = scmp.eq.s32.totalorder %s29, 1
      %p267 = por %p265, %p266
      %p268 = scmp.ne.s32.totalorder %s257, %s258
      %p269 = scmp.eq.s32.totalorder %s29, 0
      %p270 = por %p268, %p269
      %p271 = scmp.ne.s32.totalorder %s257, %s258
      %p272 = scmp.eq.s32.totalorder %s30, 1
      %p273 = por %p271, %p272
      %p275 = scmp.ne.s32.totalorder %s258, %s274
      %p276 = scmp.eq.s32.totalorder %s30, 0
      %p277 = por %p275, %p276
      %p278 = scmp.le.s32.totalorder 1, %s24
      %p279 = scmp.lt.s32.totalorder %s24, 3
      %p280 = pnand %p278, %p279
      %p281 = pneg %p280
      // Predicated region
      $region9: #{tpu_custom_call.1} parent=5 // pred_check
        _
      $region10: #{tpu_custom_call.1} parent=5 // pred_check_branch
        %283 = sbr.rel (%p280) target = $region12
      $region11: #{tpu_custom_call.1} parent=5 // pred_region
        %s284 = ssub.s32 %s24, 1
        // Predicated region
        $region13: #{tpu_custom_call.1} parent=11 // pred_check
          %p285 = pneg %p97
        $region14: #{tpu_custom_call.1} parent=11 // pred_check_branch
          %287 = sbr.rel (%p285) target = $region16
        $region15: #{tpu_custom_call.1} parent=11 // pred_region
          _
        $region16: #{tpu_custom_call.1} parent=11 // pred_fallthru
          _
        // Predicated region
        $region17: #{tpu_custom_call.1} parent=11 // pred_check
          %p288 = pneg %p118
        $region18: #{tpu_custom_call.1} parent=11 // pred_check_branch
          %290 = sbr.rel (%p288) target = $region20
        $region19: #{tpu_custom_call.1} parent=11 // pred_region
          _
        $region20: #{tpu_custom_call.1} parent=11 // pred_fallthru
          _
        // Predicated region
        $region21: #{tpu_custom_call.1} parent=11 // pred_check
          %p291 = pneg %p139
        $region22: #{tpu_custom_call.1} parent=11 // pred_check_branch
          %293 = sbr.rel (%p291) target = $region24
        $region23: #{tpu_custom_call.1} parent=11 // pred_region
          _
        $region24: #{tpu_custom_call.1} parent=11 // pred_fallthru
          _
        // Predicated region
        $region25: #{tpu_custom_call.1} parent=11 // pred_check
          %p294 = pneg %p160
        $region26: #{tpu_custom_call.1} parent=11 // pred_check_branch
          %296 = sbr.rel (%p294) target = $region28
        $region27: #{tpu_custom_call.1} parent=11 // pred_region
          _
        $region28: #{tpu_custom_call.1} parent=11 // pred_fallthru
          _
        // Predicated region
        $region29: #{tpu_custom_call.1} parent=11 // pred_check
          %p297 = pneg %p181
        $region30: #{tpu_custom_call.1} parent=11 // pred_check_branch
          %299 = sbr.rel (%p297) target = $region32
        $region31: #{tpu_custom_call.1} parent=11 // pred_region
          _
        $region32: #{tpu_custom_call.1} parent=11 // pred_fallthru
          _
        // Predicated region
        $region33: #{tpu_custom_call.1} parent=11 // pred_check
          %p300 = pneg %p202
        $region34: #{tpu_custom_call.1} parent=11 // pred_check_branch
          %302 = sbr.rel (%p300) target = $region36
        $region35: #{tpu_custom_call.1} parent=11 // pred_region
          _
        $region36: #{tpu_custom_call.1} parent=11 // pred_fallthru
          _
        // Predicated region
        $region37: #{tpu_custom_call.1} parent=11 // pred_check
          %p303 = pneg %p223
        $region38: #{tpu_custom_call.1} parent=11 // pred_check_branch
          %305 = sbr.rel (%p303) target = $region40
        $region39: #{tpu_custom_call.1} parent=11 // pred_region
          _
        $region40: #{tpu_custom_call.1} parent=11 // pred_fallthru
          _
        // Predicated region
        $region41: #{tpu_custom_call.1} parent=11 // pred_check
          %p306 = pneg %p244
        $region42: #{tpu_custom_call.1} parent=11 // pred_check_branch
          %308 = sbr.rel (%p306) target = $region44
        $region43: #{tpu_custom_call.1} parent=11 // pred_region
          _
        $region44: #{tpu_custom_call.1} parent=11 // pred_fallthru
          _
      $region12: #{tpu_custom_call.1} parent=5 // pred_fallthru
        _
      %p309 = scmp.lt.s32.totalorder %s24, 2
      // Predicated region
      $region45: #{tpu_custom_call.1} parent=5 // pred_check
        %p310 = pneg %p309
      $region46: #{tpu_custom_call.1} parent=5 // pred_check_branch
        %312 = sbr.rel (%p310) target = $region48
      $region47: #{tpu_custom_call.1} parent=5 // pred_region
        // Predicated region
        $region49: #{tpu_custom_call.1} parent=47 // pred_check
          %p313 = pneg %p44
        $region50: #{tpu_custom_call.1} parent=47 // pred_check_branch
          %315 = sbr.rel (%p313) target = $region52
        $region51: #{tpu_custom_call.1} parent=47 // pred_region
          %s316 = sand.u32 %s34, 1
          %s317 = sand.u32 %s34, 1
          %s318 = smul.addr %s317, 64
          %s319 = scalar_lea.vmem [#allocation3], %s318
          %s320 = smul.addr %s24, 8
          %s321 = scalar_lea.vmem %s0, %s320
          // Predicated region
          $region53: #{tpu_custom_call.1} parent=51 // pred_check
            _
          $region54: #{tpu_custom_call.1} parent=51 // pred_check_branch
            %323 = sbr.rel (0) target = $region56
          $region55: #{tpu_custom_call.1} parent=51 // pred_region
            // Predicated region
            $region57: #{tpu_custom_call.1} parent=55 // pred_check
              _
            $region58: #{tpu_custom_call.1} parent=55 // pred_check_branch
              %325 = sbr.rel (0) target = $region60
            $region59: #{tpu_custom_call.1} parent=55 // pred_region
              // Predicated region
              $region72: #{tpu_custom_call.1} parent=59 // pred_check
                _
              $region73: #{tpu_custom_call.1} parent=59 // pred_check_branch
                %354 = sbr.rel (0) target = $region75
              $region74: #{tpu_custom_call.1} parent=59 // pred_region
                loop: start=0, step=1, limit=1
                $region76: #{tpu_custom_call.1} parent=74 // loop_pre_header
                  _
                $region77: #{tpu_custom_call.1} parent=74 // loop_header
                  %s356 = sphi 0, %s360
                  %p357 = scmp.ge.s32.totalorder %s356, 1
                  %s361 = sphi %s321, %s321
                  %s362 = sphi %s319, %s319
                $region78: #{tpu_custom_call.1} parent=74 // loop_header_branch
                  %359 = sbr.rel (%p357) target = $region82
                $region79: #{tpu_custom_call.1} parent=74 // loop_body
                  %v363 = vld [vmem:[%s361] sm:$0xff]
                  %364 = vst [vmem:[%s362] sm:$0xff] %v363
                  %v365 = vld [vmem:[%s361 + $0x10] sm:$0xff]
                  %366 = vst [vmem:[%s362 + $0x8] sm:$0xff] %v365
                  %v367 = vld [vmem:[%s361 + $0x20] sm:$0xff]
                  %368 = vst [vmem:[%s362 + $0x10] sm:$0xff] %v367
                  %v369 = vld [vmem:[%s361 + $0x30] sm:$0xff]
                  %370 = vst [vmem:[%s362 + $0x18] sm:$0xff] %v369
                  %v371 = vld [vmem:[%s361 + $0x40] sm:$0xff]
                  %372 = vst [vmem:[%s362 + $0x20] sm:$0xff] %v371
                  %v373 = vld [vmem:[%s361 + $0x50] sm:$0xff]
                  %374 = vst [vmem:[%s362 + $0x28] sm:$0xff] %v373
                  %v375 = vld [vmem:[%s361 + $0x60] sm:$0xff]
                  %376 = vst [vmem:[%s362 + $0x30] sm:$0xff] %v375
                  %v377 = vld [vmem:[%s361 + $0x70] sm:$0xff]
                  %378 = vst [vmem:[%s362 + $0x38] sm:$0xff] %v377
                $region80: #{tpu_custom_call.1} parent=74 // loop_footer
                  %s360 = sadd.s32 1, %s356
                $region81: #{tpu_custom_call.1} parent=74 // loop_footer_branch
                  %355 = sbr.rel target = $region77
                $region82: #{tpu_custom_call.1} parent=74 // loop_exit
                  _
              $region75: #{tpu_custom_call.1} parent=59 // pred_fallthru
                _
              // Predicated region
              $region83: #{tpu_custom_call.1} parent=59 // pred_check
                _
              $region84: #{tpu_custom_call.1} parent=59 // pred_check_branch
                %380 = sbr.rel target = $region86
              $region85: #{tpu_custom_call.1} parent=59 // pred_region
                _
              $region86: #{tpu_custom_call.1} parent=59 // pred_fallthru
                _
            $region60: #{tpu_custom_call.1} parent=55 // pred_fallthru
              _
            // Predicated region
            $region61: #{tpu_custom_call.1} parent=55 // pred_check
              _
            $region62: #{tpu_custom_call.1} parent=55 // pred_check_branch
              %327 = sbr.rel target = $region64
            $region63: #{tpu_custom_call.1} parent=55 // pred_region
              loop: start=0, step=1, limit=1
              $region65: #{tpu_custom_call.1} parent=63 // loop_pre_header
                _
              $region66: #{tpu_custom_call.1} parent=63 // loop_header
                %s330 = sphi 0, %s334
                %p331 = scmp.ge.s32.totalorder %s330, 1
                %s335 = sphi %s321, %s321
                %s336 = sphi %s319, %s319
              $region67: #{tpu_custom_call.1} parent=63 // loop_header_branch
                %333 = sbr.rel (%p331) target = $region71
              $region68: #{tpu_custom_call.1} parent=63 // loop_body
                %v337 = vld [vmem:[%s335] sm:$0xff]
                %338 = vst [vmem:[%s336] sm:$0xff] %v337
                %v339 = vld [vmem:[%s335 + $0x10] sm:$0xff]
                %340 = vst [vmem:[%s336 + $0x8] sm:$0xff] %v339
                %v341 = vld [vmem:[%s335 + $0x20] sm:$0xff]
                %342 = vst [vmem:[%s336 + $0x10] sm:$0xff] %v341
                %v343 = vld [vmem:[%s335 + $0x30] sm:$0xff]
                %344 = vst [vmem:[%s336 + $0x18] sm:$0xff] %v343
                %v345 = vld [vmem:[%s335 + $0x40] sm:$0xff]
                %346 = vst [vmem:[%s336 + $0x20] sm:$0xff] %v345
                %v347 = vld [vmem:[%s335 + $0x50] sm:$0xff]
                %348 = vst [vmem:[%s336 + $0x28] sm:$0xff] %v347
                %v349 = vld [vmem:[%s335 + $0x60] sm:$0xff]
                %350 = vst [vmem:[%s336 + $0x30] sm:$0xff] %v349
                %v351 = vld [vmem:[%s335 + $0x70] sm:$0xff]
                %352 = vst [vmem:[%s336 + $0x38] sm:$0xff] %v351
              $region69: #{tpu_custom_call.1} parent=63 // loop_footer
                %s334 = sadd.s32 1, %s330
              $region70: #{tpu_custom_call.1} parent=63 // loop_footer_branch
                %329 = sbr.rel target = $region66
              $region71: #{tpu_custom_call.1} parent=63 // loop_exit
                _
            $region64: #{tpu_custom_call.1} parent=55 // pred_fallthru
              _
          $region56: #{tpu_custom_call.1} parent=51 // pred_fallthru
            _
          %381 = vnop
        $region52: #{tpu_custom_call.1} parent=47 // pred_fallthru
          _
        // Predicated region
        $region87: #{tpu_custom_call.1} parent=47 // pred_check
          %p382 = pneg %p70
        $region88: #{tpu_custom_call.1} parent=47 // pred_check_branch
          %384 = sbr.rel (%p382) target = $region90
        $region89: #{tpu_custom_call.1} parent=47 // pred_region
          %s385 = sand.u32 %s60, 1
          %s386 = scalar_lea.sflag [#allocation5], %s385
          %s387 = sand.u32 %s60, 1
          %s388 = smul.addr %s387, 64
          %s389 = scalar_lea.vmem [#allocation4], %s388
          %s391 = ssub.s32 1024, 1024
          %392 = vsyncadd %s386, %s391
          %s393 = smul.addr %s24, 128
          %s394 = scalar_lea.hbm %s1, %s393
          %s395 = sshll.u32 %s389, 4
          %s396 = int_to_ptr.vmem [resolvable:$true] %s395
          %401 = dma.hbm_to_vmem [thread:$0]  %s394, 1024, %s396, %s386, 256, 128, 8
        $region90: #{tpu_custom_call.1} parent=47 // pred_fallthru
          _
      $region48: #{tpu_custom_call.1} parent=5 // pred_fallthru
        _
      %p402 = scmp.le.s32.totalorder 1, %s24
      %p403 = scmp.lt.s32.totalorder %s24, 3
      %p404 = pnand %p402, %p403
      %p405 = pneg %p404
      // Predicated region
      $region91: #{tpu_custom_call.1} parent=5 // pred_check
        _
      $region92: #{tpu_custom_call.1} parent=5 // pred_check_branch
        %407 = sbr.rel (%p404) target = $region94
      $region93: #{tpu_custom_call.1} parent=5 // pred_region
        %s408 = ssub.s32 %s24, 1
        %s409 = sand.u32 %s37, 1
        %s410 = sand.u32 %s37, 1
        %s411 = smul.addr %s410, 64
        %s412 = scalar_lea.vmem [#allocation3], %s411
        // Predicated region
        $region95: #{tpu_custom_call.1} parent=93 // pred_check
          %p413 = pneg %p50
        $region96: #{tpu_custom_call.1} parent=93 // pred_check_branch
          %415 = sbr.rel (%p413) target = $region98
        $region97: #{tpu_custom_call.1} parent=93 // pred_region
          _
        $region98: #{tpu_custom_call.1} parent=93 // pred_fallthru
          _
        %s416 = sand.u32 %s63, 1
        %s417 = scalar_lea.sflag [#allocation5], %s416
        %s418 = sand.u32 %s63, 1
        %s419 = smul.addr %s418, 64
        %s420 = scalar_lea.vmem [#allocation4], %s419
        // Predicated region
        $region99: #{tpu_custom_call.1} parent=93 // pred_check
          %p421 = pneg %p76
        $region100: #{tpu_custom_call.1} parent=93 // pred_check_branch
          %423 = sbr.rel (%p421) target = $region102
        $region101: #{tpu_custom_call.1} parent=93 // pred_region
          %424 = dma.done %s417, 1024
        $region102: #{tpu_custom_call.1} parent=93 // pred_fallthru
          _
        %s425 = sand.u32 %s37, 1
        %s426 = sand.u32 %s37, 1
        %s427 = smul.addr %s426, 64
        %s428 = scalar_lea.vmem [#allocation3], %s427
        %p429 = pneg %p50
        %p430 = pneg %p47
        %s431 = sand.u32 %s63, 1
        %s432 = scalar_lea.sflag [#allocation5], %s431
        %s433 = sand.u32 %s63, 1
        %s434 = smul.addr %s433, 64
        %s435 = scalar_lea.vmem [#allocation4], %s434
        %p436 = pneg %p76
        %p437 = pneg %p73
        %p438 = pneg %p97
        %p439 = pneg %p94
        %p440 = pneg %p118
        %p441 = pneg %p115
        %p442 = pneg %p139
        %p443 = pneg %p136
        %p444 = pneg %p160
        %p445 = pneg %p157
        %p446 = pneg %p181
        %p447 = pneg %p178
        %p448 = pneg %p202
        %p449 = pneg %p199
        %p450 = pneg %p223
        %p451 = pneg %p220
        %p452 = pneg %p244
        %p453 = pneg %p241
        %p454 = pneg %p270
        %p455 = pneg %p267
        %s456 = sand.u32 %s257, 1
        %s457 = scalar_lea.sflag [#allocation6], %s456
        %s458 = sand.u32 %s257, 1
        %s459 = scalar_lea.vmem [#allocation7], %s458
        %v460 = vld [vmem:[%s412] sm:$0xff]
        %v461 = vld [vmem:[%s412 + $0x8] sm:$0xff]
        %v462 = vld [vmem:[%s412 + $0x10] sm:$0xff]
        %v463 = vld [vmem:[%s412 + $0x18] sm:$0xff]
        %v464 = vld [vmem:[%s412 + $0x20] sm:$0xff]
        %v465 = vld [vmem:[%s412 + $0x28] sm:$0xff]
        %v466 = vld [vmem:[%s412 + $0x30] sm:$0xff]
        %v467 = vld [vmem:[%s412 + $0x38] sm:$0xff]
        %v468 = vld [vmem:[%s420] sm:$0xff]
        %v469 = vld [vmem:[%s420 + $0x8] sm:$0xff]
        %v470 = vld [vmem:[%s420 + $0x10] sm:$0xff]
        %v471 = vld [vmem:[%s420 + $0x18] sm:$0xff]
        %v472 = vld [vmem:[%s420 + $0x20] sm:$0xff]
        %v473 = vld [vmem:[%s420 + $0x28] sm:$0xff]
        %v474 = vld [vmem:[%s420 + $0x30] sm:$0xff]
        %v475 = vld [vmem:[%s420 + $0x38] sm:$0xff]
        %v476 = vmul.f32 %v460, %v468
        %v477 = vmul.f32 %v461, %v469
        %v478 = vmul.f32 %v462, %v470
        %v479 = vmul.f32 %v463, %v471
        %v480 = vmul.f32 %v464, %v472
        %v481 = vmul.f32 %v465, %v473
        %v482 = vmul.f32 %v466, %v474
        %v483 = vmul.f32 %v467, %v475
        %v484 = vrot.slane %v476, 4
        %v485 = vadd.f32 %v476, %v484
        %v486 = vrot.slane %v485, 2
        %v487 = vadd.f32 %v485, %v486
        %v488 = vrot.slane %v487, 1
        %v489 = vadd.f32 %v487, %v488
        %v490 = vrot.slane %v477, 4
        %v491 = vadd.f32 %v477, %v490
        %v492 = vrot.slane %v491, 2
        %v493 = vadd.f32 %v491, %v492
        %v494 = vrot.slane %v493, 1
        %v495 = vadd.f32 %v493, %v494
        %v496 = vrot.slane %v478, 4
        %v497 = vadd.f32 %v478, %v496
        %v498 = vrot.slane %v497, 2
        %v499 = vadd.f32 %v497, %v498
        %v500 = vrot.slane %v499, 1
        %v501 = vadd.f32 %v499, %v500
        %v502 = vrot.slane %v479, 4
        %v503 = vadd.f32 %v479, %v502
        %v504 = vrot.slane %v503, 2
        %v505 = vadd.f32 %v503, %v504
        %v506 = vrot.slane %v505, 1
        %v507 = vadd.f32 %v505, %v506
        %v508 = vrot.slane %v480, 4
        %v509 = vadd.f32 %v480, %v508
        %v510 = vrot.slane %v509, 2
        %v511 = vadd.f32 %v509, %v510
        %v512 = vrot.slane %v511, 1
        %v513 = vadd.f32 %v511, %v512
        %v514 = vrot.slane %v481, 4
        %v515 = vadd.f32 %v481, %v514
        %v516 = vrot.slane %v515, 2
        %v517 = vadd.f32 %v515, %v516
        %v518 = vrot.slane %v517, 1
        %v519 = vadd.f32 %v517, %v518
        %v520 = vrot.slane %v482, 4
        %v521 = vadd.f32 %v482, %v520
        %v522 = vrot.slane %v521, 2
        %v523 = vadd.f32 %v521, %v522
        %v524 = vrot.slane %v523, 1
        %v525 = vadd.f32 %v523, %v524
        %v526 = vrot.slane %v483, 4
        %v527 = vadd.f32 %v483, %v526
        %v528 = vrot.slane %v527, 2
        %v529 = vadd.f32 %v527, %v528
        %v530 = vrot.slane %v529, 1
        %v531 = vadd.f32 %v529, %v530
        %v532 = vmul.f32 %v460, %v460
        %v533 = vmul.f32 %v461, %v461
        %v534 = vmul.f32 %v462, %v462
        %v535 = vmul.f32 %v463, %v463
        %v536 = vmul.f32 %v464, %v464
        %v537 = vmul.f32 %v465, %v465
        %v538 = vmul.f32 %v466, %v466
        %v539 = vmul.f32 %v467, %v467
        %v540 = vrot.slane %v532, 4
        %v541 = vadd.f32 %v532, %v540
        %v542 = vrot.slane %v541, 2
        %v543 = vadd.f32 %v541, %v542
        %v544 = vrot.slane %v543, 1
        %v545 = vadd.f32 %v543, %v544
        %v546 = vrot.slane %v533, 4
        %v547 = vadd.f32 %v533, %v546
        %v548 = vrot.slane %v547, 2
        %v549 = vadd.f32 %v547, %v548
        %v550 = vrot.slane %v549, 1
        %v551 = vadd.f32 %v549, %v550
        %v552 = vrot.slane %v534, 4
        %v553 = vadd.f32 %v534, %v552
        %v554 = vrot.slane %v553, 2
        %v555 = vadd.f32 %v553, %v554
        %v556 = vrot.slane %v555, 1
        %v557 = vadd.f32 %v555, %v556
        %v558 = vrot.slane %v535, 4
        %v559 = vadd.f32 %v535, %v558
        %v560 = vrot.slane %v559, 2
        %v561 = vadd.f32 %v559, %v560
        %v562 = vrot.slane %v561, 1
        %v563 = vadd.f32 %v561, %v562
        %v564 = vrot.slane %v536, 4
        %v565 = vadd.f32 %v536, %v564
        %v566 = vrot.slane %v565, 2
        %v567 = vadd.f32 %v565, %v566
        %v568 = vrot.slane %v567, 1
        %v569 = vadd.f32 %v567, %v568
        %v570 = vrot.slane %v537, 4
        %v571 = vadd.f32 %v537, %v570
        %v572 = vrot.slane %v571, 2
        %v573 = vadd.f32 %v571, %v572
        %v574 = vrot.slane %v573, 1
        %v575 = vadd.f32 %v573, %v574
        %v576 = vrot.slane %v538, 4
        %v577 = vadd.f32 %v538, %v576
        %v578 = vrot.slane %v577, 2
        %v579 = vadd.f32 %v577, %v578
        %v580 = vrot.slane %v579, 1
        %v581 = vadd.f32 %v579, %v580
        %v582 = vrot.slane %v539, 4
        %v583 = vadd.f32 %v539, %v582
        %v584 = vrot.slane %v583, 2
        %v585 = vadd.f32 %v583, %v584
        %v586 = vrot.slane %v585, 1
        %v587 = vadd.f32 %v585, %v586
        %v588 = vmul.f32 %v468, %v468
        %v589 = vmul.f32 %v469, %v469
        %v590 = vmul.f32 %v470, %v470
        %v591 = vmul.f32 %v471, %v471
        %v592 = vmul.f32 %v472, %v472
        %v593 = vmul.f32 %v473, %v473
        %v594 = vmul.f32 %v474, %v474
        %v595 = vmul.f32 %v475, %v475
        %v596 = vrot.slane %v588, 4
        %v597 = vadd.f32 %v588, %v596
        %v598 = vrot.slane %v597, 2
        %v599 = vadd.f32 %v597, %v598
        %v600 = vrot.slane %v599, 1
        %v601 = vadd.f32 %v599, %v600
        %v602 = vrot.slane %v589, 4
        %v603 = vadd.f32 %v589, %v602
        %v604 = vrot.slane %v603, 2
        %v605 = vadd.f32 %v603, %v604
        %v606 = vrot.slane %v605, 1
        %v607 = vadd.f32 %v605, %v606
        %v608 = vrot.slane %v590, 4
        %v609 = vadd.f32 %v590, %v608
        %v610 = vrot.slane %v609, 2
        %v611 = vadd.f32 %v609, %v610
        %v612 = vrot.slane %v611, 1
        %v613 = vadd.f32 %v611, %v612
        %v614 = vrot.slane %v591, 4
        %v615 = vadd.f32 %v591, %v614
        %v616 = vrot.slane %v615, 2
        %v617 = vadd.f32 %v615, %v616
        %v618 = vrot.slane %v617, 1
        %v619 = vadd.f32 %v617, %v618
        %v620 = vrot.slane %v592, 4
        %v621 = vadd.f32 %v592, %v620
        %v622 = vrot.slane %v621, 2
        %v623 = vadd.f32 %v621, %v622
        %v624 = vrot.slane %v623, 1
        %v625 = vadd.f32 %v623, %v624
        %v626 = vrot.slane %v593, 4
        %v627 = vadd.f32 %v593, %v626
        %v628 = vrot.slane %v627, 2
        %v629 = vadd.f32 %v627, %v628
        %v630 = vrot.slane %v629, 1
        %v631 = vadd.f32 %v629, %v630
        %v632 = vrot.slane %v594, 4
        %v633 = vadd.f32 %v594, %v632
        %v634 = vrot.slane %v633, 2
        %v635 = vadd.f32 %v633, %v634
        %v636 = vrot.slane %v635, 1
        %v637 = vadd.f32 %v635, %v636
        %v638 = vrot.slane %v595, 4
        %v639 = vadd.f32 %v595, %v638
        %v640 = vrot.slane %v639, 2
        %v641 = vadd.f32 %v639, %v640
        %v642 = vrot.slane %v641, 1
        %v643 = vadd.f32 %v641, %v642
        %v644 = vmul.f32 %v545, %v601
        %v645 = vmul.f32 %v551, %v607
        %v646 = vmul.f32 %v557, %v613
        %v647 = vmul.f32 %v563, %v619
        %v648 = vmul.f32 %v569, %v625
        %v649 = vmul.f32 %v575, %v631
        %v650 = vmul.f32 %v581, %v637
        %v651 = vmul.f32 %v587, %v643
        %v652 = vmax.f32 %v644, 1e-16
        %v653 = vmax.f32 %v645, 1e-16
        %v654 = vmax.f32 %v646, 1e-16
        %v655 = vmax.f32 %v647, 1e-16
        %v656 = vmax.f32 %v648, 1e-16
        %v657 = vmax.f32 %v649, 1e-16
        %v658 = vmax.f32 %v650, 1e-16
        %v659 = vmax.f32 %v651, 1e-16
        %v660 = vrsqrt.pop %v652
        %v661 = vrsqrt.pop %v653
        %v662 = vrsqrt.pop %v654
        %v663 = vrsqrt.pop %v655
        %v664 = vrsqrt.pop %v656
        %v665 = vrsqrt.pop %v657
        %v666 = vrsqrt.pop %v658
        %v667 = vrsqrt.pop %v659
        %v668 = vmul.f32 %v489, %v660
        %v669 = vmul.f32 %v495, %v661
        %v670 = vmul.f32 %v501, %v662
        %v671 = vmul.f32 %v507, %v663
        %v672 = vmul.f32 %v513, %v664
        %v673 = vmul.f32 %v519, %v665
        %v674 = vmul.f32 %v525, %v666
        %v675 = vmul.f32 %v531, %v667
        %v676 = vld [vmem:[%s2] sm:$0xff]
        %678 = vset.pattern.permute.xlu0 0
        %679 = vperm.xlu0 %678, %v676
        %v680 = vpop.permute.xlu0 %679
        %vm690 = vcmask 1041409
        %v691 = vsel %vm690, %v669, %v668
        %vm692 = vcmask 1042434
        %v693 = vsel %vm692, %v670, %v691
        %vm694 = vcmask 1043459
        %v695 = vsel %vm694, %v671, %v693
        %vm696 = vcmask 1044484
        %v697 = vsel %vm696, %v672, %v695
        %vm698 = vcmask 1045509
        %v699 = vsel %vm698, %v673, %v697
        %vm700 = vcmask 1046534
        %v701 = vsel %vm700, %v674, %v699
        %vm702 = vcmask 1047559
        %v703 = vsel %vm702, %v675, %v701
        %v705 = vmul.f32 %v680, %v703
        %706 = vset.pattern.permute.xlu0 1
        %707 = vperm.xlu0 %706, %v676
        %v708 = vpop.permute.xlu0 %707
        %v718 = vsel %vm690, %v495, %v489
        %v719 = vsel %vm692, %v501, %v718
        %v720 = vsel %vm694, %v507, %v719
        %v721 = vsel %vm696, %v513, %v720
        %v722 = vsel %vm698, %v519, %v721
        %v723 = vsel %vm700, %v525, %v722
        %v724 = vsel %vm702, %v531, %v723
        %v726 = vmul.f32 %v708, %v724
        %v727 = vld [vmem:[%s3] sm:$0xff]
        %v728 = vld [vmem:[%s3 + $0x8] sm:$0xff]
        %v729 = vld [vmem:[%s3 + $0x10] sm:$0xff]
        %v730 = vld [vmem:[%s3 + $0x18] sm:$0xff]
        %v731 = vld [vmem:[%s4] sm:$0xff]
        %v732 = vld [vmem:[%s4 + $0x8] sm:$0xff]
        %v733 = vld [vmem:[%s4 + $0x10] sm:$0xff]
        %v734 = vld [vmem:[%s4 + $0x18] sm:$0xff]
        %vm735 = vcmask 64512
        %v737 = vsel %vm735, %v731, 0
        %v740 = vsel %vm735, %v732, 0
        %v743 = vsel %vm735, %v733, 0
        %v746 = vsel %vm735, %v734, 0
        %748 = vmatprep.subr.mxu0 0.0
        %749 = vmatpush1.msra.mxu0 %v726
        %750 = vmatprep.subr.mxu0 0.0
        %751 = vmatpush1.msra.mxu0 0.0
        %752 = vmatprep.subr.mxu0 0.0
        %753 = vmatpush1.msra.mxu0 0.0
        %754 = vmatprep.subr.mxu0 0.0
        %755 = vmatpush1.msra.mxu0 0.0
        %756 = vmatprep.subr.mxu0 0.0
        %757 = vmatpush1.msra.mxu0 0.0
        %758 = vmatprep.subr.mxu0 0.0
        %759 = vmatpush1.msra.mxu0 0.0
        %760 = vmatprep.subr.mxu0 0.0
        %761 = vmatpush1.msra.mxu0 0.0
        %762 = vmatprep.subr.mxu0 0.0
        %763 = vmatpush1.msra.mxu0 0.0
        %764 = vmatprep.subr.mxu0 0.0
        %765 = vmatpush1.msra.mxu0 0.0
        %766 = vmatprep.subr.mxu0 0.0
        %767 = vmatpush1.msra.mxu0 0.0
        %768 = vmatprep.subr.mxu0 0.0
        %769 = vmatpush1.msra.mxu0 0.0
        %770 = vmatprep.subr.mxu0 0.0
        %771 = vmatpush1.msra.mxu0 0.0
        %772 = vmatprep.subr.mxu0 0.0
        %773 = vmatpush1.msra.mxu0 0.0
        %774 = vmatprep.subr.mxu0 0.0
        %775 = vmatpush1.msra.mxu0 0.0
        %776 = vmatprep.subr.mxu0 0.0
        %777 = vmatpush1.msra.mxu0 0.0
        %778 = vmatprep.subr.mxu0 0.0
        %779 = vmatpush1.msra.mxu0 0.0
        %780 = vmatprep.subr.mxu0 0.0
        %781 = vmatpush1.msra.mxu0 0.0
        %782 = vmatprep.subr.mxu0 0.0
        %783 = vmatpush1.msra.mxu0 0.0
        %784 = vmatprep.subr.mxu0 0.0
        %785 = vmatpush1.msra.mxu0 0.0
        %786 = vmatprep.subr.mxu0 0.0
        %787 = vmatpush1.msra.mxu0 0.0
        %788 = vmatprep.subr.mxu0 0.0
        %789 = vmatpush1.msra.mxu0 0.0
        %790 = vmatprep.subr.mxu0 0.0
        %791 = vmatpush1.msra.mxu0 0.0
        %792 = vmatprep.subr.mxu0 0.0
        %793 = vmatpush1.msra.mxu0 0.0
        %794 = vmatprep.subr.mxu0 0.0
        %795 = vmatpush1.msra.mxu0 0.0
        %796 = vmatprep.subr.mxu0 0.0
        %797 = vmatpush1.msra.mxu0 0.0
        %798 = vmatprep.subr.mxu0 0.0
        %799 = vmatpush1.msra.mxu0 0.0
        %800 = vmatprep.subr.mxu0 0.0
        %801 = vmatpush1.msra.mxu0 0.0
        %802 = vmatprep.subr.mxu0 0.0
        %803 = vmatpush1.msra.mxu0 0.0
        %804 = vmatprep.subr.mxu0 0.0
        %805 = vmatpush1.msra.mxu0 0.0
        %806 = vmatprep.subr.mxu0 0.0
        %807 = vmatpush1.msra.mxu0 0.0
        %808 = vmatprep.subr.mxu0 0.0
        %809 = vmatpush1.msra.mxu0 0.0
        %810 = vmatprep.subr.mxu0 0.0
        %811 = vmatpush1.msra.mxu0 0.0
        %812 = vmatprep.mubr.f32.mxu0 0.0
        %813 = vmatmul.mubr.f32.gmra.mrb[0].mxu0 %v737
        %v814 = vpop.f32.mrb[0].mxu0
        %v815 = vadd.f32 0.0, %v814
        %v816 = vpop.f32.mrb[0].mxu0
        %817 = vmatprep.mubr.f32.mxu0 0.0
        %818 = vmatmul.mubr.f32.gmra.mrb[0].mxu0 %v740
        %v819 = vpop.f32.mrb[0].mxu0
        %v820 = vadd.f32 0.0, %v819
        %v821 = vpop.f32.mrb[0].mxu0
        %822 = vmatprep.mubr.f32.mxu0 0.0
        %823 = vmatmul.mubr.f32.gmra.mrb[0].mxu0 %v743
        %v824 = vpop.f32.mrb[0].mxu0
        %v825 = vadd.f32 0.0, %v824
        %v826 = vpop.f32.mrb[0].mxu0
        %827 = vmatprep.mubr.f32.mxu0 0.0
        %828 = vmatmul.mubr.f32.gmra.mrb[0].mxu0 %v746
        %v829 = vpop.f32.mrb[0].mxu0
        %v830 = vadd.f32 0.0, %v829
        %v831 = vpop.f32.mrb[0].mxu0
        %832 = vdwg.mxu0
        %v834 = vsel %vm735, %v727, 0
        %v837 = vsel %vm735, %v728, 0
        %v840 = vsel %vm735, %v729, 0
        %v843 = vsel %vm735, %v730, 0
        %845 = vmatprep.subr.mxu0 0.0
        %846 = vmatpush1.msra.mxu0 %v705
        %847 = vmatprep.subr.mxu0 0.0
        %848 = vmatpush1.msra.mxu0 0.0
        %849 = vmatprep.subr.mxu0 0.0
        %850 = vmatpush1.msra.mxu0 0.0
        %851 = vmatprep.subr.mxu0 0.0
        %852 = vmatpush1.msra.mxu0 0.0
        %853 = vmatprep.subr.mxu0 0.0
        %854 = vmatpush1.msra.mxu0 0.0
        %855 = vmatprep.subr.mxu0 0.0
        %856 = vmatpush1.msra.mxu0 0.0
        %857 = vmatprep.subr.mxu0 0.0
        %858 = vmatpush1.msra.mxu0 0.0
        %859 = vmatprep.subr.mxu0 0.0
        %860 = vmatpush1.msra.mxu0 0.0
        %861 = vmatprep.subr.mxu0 0.0
        %862 = vmatpush1.msra.mxu0 0.0
        %863 = vmatprep.subr.mxu0 0.0
        %864 = vmatpush1.msra.mxu0 0.0
        %865 = vmatprep.subr.mxu0 0.0
        %866 = vmatpush1.msra.mxu0 0.0
        %867 = vmatprep.subr.mxu0 0.0
        %868 = vmatpush1.msra.mxu0 0.0
        %869 = vmatprep.subr.mxu0 0.0
        %870 = vmatpush1.msra.mxu0 0.0
        %871 = vmatprep.subr.mxu0 0.0
        %872 = vmatpush1.msra.mxu0 0.0
        %873 = vmatprep.subr.mxu0 0.0
        %874 = vmatpush1.msra.mxu0 0.0
        %875 = vmatprep.subr.mxu0 0.0
        %876 = vmatpush1.msra.mxu0 0.0
        %877 = vmatprep.subr.mxu0 0.0
        %878 = vmatpush1.msra.mxu0 0.0
        %879 = vmatprep.subr.mxu0 0.0
        %880 = vmatpush1.msra.mxu0 0.0
        %881 = vmatprep.subr.mxu0 0.0
        %882 = vmatpush1.msra.mxu0 0.0
        %883 = vmatprep.subr.mxu0 0.0
        %884 = vmatpush1.msra.mxu0 0.0
        %885 = vmatprep.subr.mxu0 0.0
        %886 = vmatpush1.msra.mxu0 0.0
        %887 = vmatprep.subr.mxu0 0.0
        %888 = vmatpush1.msra.mxu0 0.0
        %889 = vmatprep.subr.mxu0 0.0
        %890 = vmatpush1.msra.mxu0 0.0
        %891 = vmatprep.subr.mxu0 0.0
        %892 = vmatpush1.msra.mxu0 0.0
        %893 = vmatprep.subr.mxu0 0.0
        %894 = vmatpush1.msra.mxu0 0.0
        %895 = vmatprep.subr.mxu0 0.0
        %896 = vmatpush1.msra.mxu0 0.0
        %897 = vmatprep.subr.mxu0 0.0
        %898 = vmatpush1.msra.mxu0 0.0
        %899 = vmatprep.subr.mxu0 0.0
        %900 = vmatpush1.msra.mxu0 0.0
        %901 = vmatprep.subr.mxu0 0.0
        %902 = vmatpush1.msra.mxu0 0.0
        %903 = vmatprep.subr.mxu0 0.0
        %904 = vmatpush1.msra.mxu0 0.0
        %905 = vmatprep.subr.mxu0 0.0
        %906 = vmatpush1.msra.mxu0 0.0
        %907 = vmatprep.subr.mxu0 0.0
        %908 = vmatpush1.msra.mxu0 0.0
        %909 = vmatprep.mubr.f32.mxu0 0.0
        %910 = vmatmul.mubr.f32.gmra.mrb[0].mxu0 %v834
        %v911 = vpop.f32.mrb[0].mxu0
        %v912 = vadd.f32 %v815, %v911
        %v913 = vpop.f32.mrb[0].mxu0
        %914 = vmatprep.mubr.f32.mxu0 0.0
        %915 = vmatmul.mubr.f32.gmra.mrb[0].mxu0 %v837
        %v916 = vpop.f32.mrb[0].mxu0
        %v917 = vadd.f32 %v820, %v916
        %v918 = vpop.f32.mrb[0].mxu0
        %919 = vmatprep.mubr.f32.mxu0 0.0
        %920 = vmatmul.mubr.f32.gmra.mrb[0].mxu0 %v840
        %v921 = vpop.f32.mrb[0].mxu0
        %v922 = vadd.f32 %v825, %v921
        %v923 = vpop.f32.mrb[0].mxu0
        %924 = vmatprep.mubr.f32.mxu0 0.0
        %925 = vmatmul.mubr.f32.gmra.mrb[0].mxu0 %v843
        %v926 = vpop.f32.mrb[0].mxu0
        %v927 = vadd.f32 %v830, %v926
        %v928 = vpop.f32.mrb[0].mxu0
        %929 = vdwg.mxu0
        %v930 = vld [vmem:[%s5] sm:$0xff]
        %v931 = vld [vmem:[%s5 + $0x8] sm:$0xff]
        %v932 = vld [vmem:[%s5 + $0x10] sm:$0xff]
        %v933 = vld [vmem:[%s5 + $0x18] sm:$0xff]
        %935 = vset.pattern.permute.xlu0 0
        %936 = vperm.xlu0 %935, %v930
        %v937 = vpop.permute.xlu0 %936
        %940 = vset.pattern.permute.xlu0 0
        %941 = vperm.xlu0 %940, %v931
        %v942 = vpop.permute.xlu0 %941
        %945 = vset.pattern.permute.xlu0 0
        %946 = vperm.xlu0 %945, %v932
        %v947 = vpop.permute.xlu0 %946
        %950 = vset.pattern.permute.xlu0 0
        %951 = vperm.xlu0 %950, %v933
        %v952 = vpop.permute.xlu0 %951
        %v954 = vadd.f32 %v912, %v937
        %v955 = vadd.f32 %v917, %v942
        %v956 = vadd.f32 %v922, %v947
        %v957 = vadd.f32 %v927, %v952
        %v958 = vmax.f32 %v954, 0.0
        %v959 = vmax.f32 %v955, 0.0
        %v960 = vmax.f32 %v956, 0.0
        %v961 = vmax.f32 %v957, 0.0
        %v962 = vld [vmem:[%s6] sm:$0xff]
        %v963 = vld [vmem:[%s6 + $0x8] sm:$0xff]
        %v964 = vld [vmem:[%s7] sm:$0xff]
        %v965 = vld [vmem:[%s7 + $0x8] sm:$0xff]
        %967 = vset.pattern.permute.xlu0 0
        %968 = vperm.xlu0 %967, %v964
        %v969 = vpop.permute.xlu0 %968
        %972 = vset.pattern.permute.xlu0 0
        %973 = vperm.xlu0 %972, %v965
        %v974 = vpop.permute.xlu0 %973
        %vm976 = vcmask 261120
        %v978 = vsel %vm976, %v962, 0
        %v981 = vsel %vm976, %v963, 0
        %983 = vmatprep.subr.mxu0 0.0
        %984 = vmatpush1.msra.mxu0 %v958
        %985 = vmatprep.subr.mxu0 0.0
        %986 = vmatpush1.msra.mxu0 %v959
        %987 = vmatprep.subr.mxu0 0.0
        %988 = vmatpush1.msra.mxu0 %v960
        %989 = vmatprep.subr.mxu0 0.0
        %990 = vmatpush1.msra.mxu0 %v961
        %991 = vmatprep.subr.mxu0 0.0
        %992 = vmatpush1.msra.mxu0 0.0
        %993 = vmatprep.subr.mxu0 0.0
        %994 = vmatpush1.msra.mxu0 0.0
        %995 = vmatprep.subr.mxu0 0.0
        %996 = vmatpush1.msra.mxu0 0.0
        %997 = vmatprep.subr.mxu0 0.0
        %998 = vmatpush1.msra.mxu0 0.0
        %999 = vmatprep.subr.mxu0 0.0
        %1000 = vmatpush1.msra.mxu0 0.0
        %1001 = vmatprep.subr.mxu0 0.0
        %1002 = vmatpush1.msra.mxu0 0.0
        %1003 = vmatprep.subr.mxu0 0.0
        %1004 = vmatpush1.msra.mxu0 0.0
        %1005 = vmatprep.subr.mxu0 0.0
        %1006 = vmatpush1.msra.mxu0 0.0
        %1007 = vmatprep.subr.mxu0 0.0
        %1008 = vmatpush1.msra.mxu0 0.0
        %1009 = vmatprep.subr.mxu0 0.0
        %1010 = vmatpush1.msra.mxu0 0.0
        %1011 = vmatprep.subr.mxu0 0.0
        %1012 = vmatpush1.msra.mxu0 0.0
        %1013 = vmatprep.subr.mxu0 0.0
        %1014 = vmatpush1.msra.mxu0 0.0
        %1015 = vmatprep.subr.mxu0 0.0
        %1016 = vmatpush1.msra.mxu0 0.0
        %1017 = vmatprep.subr.mxu0 0.0
        %1018 = vmatpush1.msra.mxu0 0.0
        %1019 = vmatprep.subr.mxu0 0.0
        %1020 = vmatpush1.msra.mxu0 0.0
        %1021 = vmatprep.subr.mxu0 0.0
        %1022 = vmatpush1.msra.mxu0 0.0
        %1023 = vmatprep.subr.mxu0 0.0
        %1024 = vmatpush1.msra.mxu0 0.0
        %1025 = vmatprep.subr.mxu0 0.0
        %1026 = vmatpush1.msra.mxu0 0.0
        %1027 = vmatprep.subr.mxu0 0.0
        %1028 = vmatpush1.msra.mxu0 0.0
        %1029 = vmatprep.subr.mxu0 0.0
        %1030 = vmatpush1.msra.mxu0 0.0
        %1031 = vmatprep.subr.mxu0 0.0
        %1032 = vmatpush1.msra.mxu0 0.0
        %1033 = vmatprep.subr.mxu0 0.0
        %1034 = vmatpush1.msra.mxu0 0.0
        %1035 = vmatprep.subr.mxu0 0.0
        %1036 = vmatpush1.msra.mxu0 0.0
        %1037 = vmatprep.subr.mxu0 0.0
        %1038 = vmatpush1.msra.mxu0 0.0
        %1039 = vmatprep.subr.mxu0 0.0
        %1040 = vmatpush1.msra.mxu0 0.0
        %1041 = vmatprep.subr.mxu0 0.0
        %1042 = vmatpush1.msra.mxu0 0.0
        %1043 = vmatprep.subr.mxu0 0.0
        %1044 = vmatpush1.msra.mxu0 0.0
        %1045 = vmatprep.subr.mxu0 0.0
        %1046 = vmatpush1.msra.mxu0 0.0
        %1047 = vmatprep.mubr.f32.mxu0 0.0
        %1048 = vmatmul.mubr.f32.gmra.mrb[0].mxu0 %v978
        %v1049 = vpop.f32.mrb[0].mxu0
        %v1050 = vadd.f32 %v969, %v1049
        %v1051 = vpop.f32.mrb[0].mxu0
        %1052 = vmatprep.mubr.f32.mxu0 0.0
        %1053 = vmatmul.mubr.f32.gmra.mrb[0].mxu0 %v981
        %v1054 = vpop.f32.mrb[0].mxu0
        %v1055 = vadd.f32 %v974, %v1054
        %v1056 = vpop.f32.mrb[0].mxu0
        %1057 = vdwg.mxu0
        %v1058 = vmax.f32 %v1050, 0.0
        %v1059 = vmax.f32 %v1055, 0.0
        %v1060 = vld [vmem:[%s8] sm:$0xff]
        %v1061 = vld [vmem:[%s8 + $0x8] sm:$0xff]
        %1063 = vset.pattern.permute.xlu0 0
        %1064 = vperm.xlu0 %1063, %v1060
        %v1065 = vpop.permute.xlu0 %1064
        %1068 = vset.pattern.permute.xlu0 0
        %1069 = vperm.xlu0 %1068, %v1061
        %v1070 = vpop.permute.xlu0 %1069
        %v1072 = vmul.f32 %v1065, %v1058
        %v1073 = vmul.f32 %v1070, %v1059
        %v1074 = vadd.f32 %v1072, %v1073
        %v1075 = vrot.slane %v1074, 4
        %v1076 = vadd.f32 %v1074, %v1075
        %v1077 = vrot.slane %v1076, 2
        %v1078 = vadd.f32 %v1076, %v1077
        %v1079 = vrot.slane %v1078, 1
        %v1080 = vadd.f32 %v1078, %v1079
        %v1081 = vld [vmem:[#allocation2] sm:$0x1]
        %1083 = vset.pattern.permute.xlu0 0
        %1084 = vperm.xlu0 %1083, %v1081
        %v1085 = vpop.permute.xlu0 %1084
        %v1087 = vlaneseq
        %v1088 = vshrl.u32 %v1087, 7
        %v1089 = vsub.s32 0, %v1088
        %v1090 = vrot.slane %v1085, %v1089
        %v1091 = vadd.f32 %v1080, %v1090
        %v1092 = vxor.u32 %v1091, 2147483648
        %v1093 = vmul.f32 %v1092, 1.442695
        %v1094 = vpow.pop %v1093
        %v1095 = vadd.f32 %v1094, 1.0
        %v1096 = vrcp.pop %v1095
        %v1097 = vmul.f32 1.0, %v1096
        %1098 = vst [vmem:[%s459] sm:$0x1] %v1097
        %s1099 = sand.u32 %s257, 1
        %s1100 = scalar_lea.sflag [#allocation6], %s1099
        %s1101 = sand.u32 %s257, 1
        %s1102 = scalar_lea.vmem [#allocation7], %s1101
        // Predicated region
        $region103: #{tpu_custom_call.1} parent=93 // pred_check
          %p1103 = pneg %p267
        $region104: #{tpu_custom_call.1} parent=93 // pred_check_branch
          %1105 = sbr.rel (%p1103) target = $region106
        $region105: #{tpu_custom_call.1} parent=93 // pred_region
          %s1107 = ssub.s32 16, 16
          %1108 = vsyncadd %s1100, %s1107
          %s1109 = smul.addr %s29, 16
          %s1110 = scalar_lea.hbm %s10, %s1109
          %s1112 = sshll.u32 %s1102, 4
          %s1113 = int_to_ptr.vmem [resolvable:$true] %s1112
          %1115 = dma.vmem_to_hbm [thread:$0]  %s1113, 16, %s1110, %s1100
        $region106: #{tpu_custom_call.1} parent=93 // pred_fallthru
          _
      $region94: #{tpu_custom_call.1} parent=5 // pred_fallthru
        _
      %p1116 = scmp.le.s32.totalorder 2, %s24
      // Predicated region
      $region107: #{tpu_custom_call.1} parent=5 // pred_check
        %p1117 = pneg %p1116
      $region108: #{tpu_custom_call.1} parent=5 // pred_check_branch
        %1119 = sbr.rel (%p1117) target = $region110
      $region109: #{tpu_custom_call.1} parent=5 // pred_region
        %s1120 = ssub.s32 %s24, 2
        // Predicated region
        $region111: #{tpu_custom_call.1} parent=109 // pred_check
          %p1121 = pneg %p273
        $region112: #{tpu_custom_call.1} parent=109 // pred_check_branch
          %1123 = sbr.rel (%p1121) target = $region114
        $region113: #{tpu_custom_call.1} parent=109 // pred_region
          %s1124 = sand.u32 %s258, 1
          %s1125 = scalar_lea.sflag [#allocation6], %s1124
          %s1126 = sand.u32 %s258, 1
          %s1127 = scalar_lea.vmem [#allocation7], %s1126
          %1128 = dma.done %s1125, 16
        $region114: #{tpu_custom_call.1} parent=109 // pred_fallthru
          _
      $region110: #{tpu_custom_call.1} parent=5 // pred_fallthru
        _
    $region6: #{tpu_custom_call.1} parent=1 // loop_footer
      %s28 = sadd.s32 1, %s24
    $region7: #{tpu_custom_call.1} parent=1 // loop_footer_branch
      %23 = sbr.rel target = $region3
    $region8: #{tpu_custom_call.1} parent=1 // loop_exit
      _
    %1129 = vsyncpa [#allocation5], 1
    %s1130 = scalar_lea.sflag [#allocation5], 1
    %1131 = vsyncpa %s1130, 1
    %1132 = vsyncpa [#allocation6], 1
    %s1133 = scalar_lea.sflag [#allocation6], 1
    %1134 = vsyncpa %s1133, 1

</llo_original>
